<compile_context>
chip_gen: v7x
topology: tpu7x:2x2x1
jax: 0.10.0
libtpu: 0.0.40
codegen_flags: <defaults>
</compile_context>

<pallas_src>
import functools

import jax
import jax.numpy as jnp
from jax import lax
from jax.experimental import pallas as pl
from jax.experimental.pallas import tpu as pltpu


# -----------------------------------------------------------------------------
# Kernel: one (batch row, span tile).
#   for i in [0, TN):  gather rows  p_start[start[i]], p_end[end[i]],
#                                   p_mul[start[i]],   p_mul[end[i]]
#   out = tanh(g_s + g_e + g_ms * g_me)        (batched, f32, lane-dense (TN,H))
# -----------------------------------------------------------------------------
def _gather_combine_kernel(start_ref, end_ref,            # SMEM (scalar prefetch)
                           ps_ref, pe_ref, pm_ref,        # VMEM slabs (S, H)
                           out_ref,                       # VMEM (TN, H)
                           g_s, g_e, g_ms, g_me,          # VMEM scratch (TN, H)
                           *, tile_axis, tn):
    base = pl.program_id(tile_axis) * tn

    def gather_row(i, carry):
        si = start_ref[base + i]
        ei = end_ref[base + i]
        g_s[pl.ds(i, 1), :] = ps_ref[pl.ds(si, 1), :]
        g_e[pl.ds(i, 1), :] = pe_ref[pl.ds(ei, 1), :]
        g_ms[pl.ds(i, 1), :] = pm_ref[pl.ds(si, 1), :]
        g_me[pl.ds(i, 1), :] = pm_ref[pl.ds(ei, 1), :]
        return carry

    lax.fori_loop(0, tn, gather_row, 0)

    span = (g_s[...].astype(jnp.float32) + g_e[...].astype(jnp.float32)
            + g_ms[...].astype(jnp.float32) * g_me[...].astype(jnp.float32))
    out_ref[...] = jnp.tanh(span).astype(out_ref.dtype)


# -----------------------------------------------------------------------------
# Pallas wrapper: fused gather + combine + tanh over projected slabs.
# -----------------------------------------------------------------------------
def sic_span_pallas(p_start, p_end, p_mul, start_idx, end_idx,
                    *, out_dtype=None, max_tile=256):
    B, S, H = p_start.shape
    N = int(start_idx.shape[0])
    out_dtype = out_dtype if out_dtype is not None else p_start.dtype

    # Fixed span tile (no divisor hunting); ragged last block handled by Pallas.
    TN = N if N <= max_tile else max_tile
    n_tiles = pl.cdiv(N, TN)
    n_pad = n_tiles * TN - N
    start_p = jnp.pad(start_idx.astype(jnp.int32), (0, n_pad))
    end_p = jnp.pad(end_idx.astype(jnp.int32), (0, n_pad))

    if B > 1:
        # Batch outer: slab block index only changes with b, so the three slabs
        # stay VMEM-resident across all span tiles of a batch row.
        grid = (B, n_tiles)
        tile_axis = 1
        slab_spec = pl.BlockSpec((None, S, H), lambda b, n, si, ei: (b, 0, 0))
        out_spec = pl.BlockSpec((None, TN, H), lambda b, n, si, ei: (b, n, 0))
        dims = ("parallel", "parallel")
    else:
        # Single batch row: make the span axis the only grid axis so megacore
        # (v7x, 2 TCs) shards the large axis instead of a size-1 batch axis.
        grid = (n_tiles,)
        tile_axis = 0
        slab_spec = pl.BlockSpec((None, S, H), lambda n, si, ei: (0, 0, 0))
        out_spec = pl.BlockSpec((None, TN, H), lambda n, si, ei: (0, n, 0))
        dims = ("parallel",)

    isz = jnp.dtype(p_start.dtype).itemsize
    osz = jnp.dtype(out_dtype).itemsize
    footprint = (3 * 2 * S * H * isz        # 3 slabs, double-buffered
                 + 4 * TN * H * isz         # gather scratch
                 + 2 * TN * H * osz         # output tile, double-buffered
                 + 2 * TN * H * 4)          # f32 combine temporaries
    # 25% headroom, never request the whole 64 MiB of a v7x TensorCore.
    vmem_limit = int(min(max(footprint * 1.25, 16 << 20), 56 << 20))

    kernel = functools.partial(_gather_combine_kernel, tile_axis=tile_axis, tn=TN)

    return pl.pallas_call(
        kernel,
        out_shape=jax.ShapeDtypeStruct((B, N, H), out_dtype),
        grid_spec=pltpu.PrefetchScalarGridSpec(
            num_scalar_prefetch=2,                 # start_idx, end_idx -> SMEM
            grid=grid,
            in_specs=[slab_spec, slab_spec, slab_spec],
            out_specs=out_spec,
            scratch_shapes=[pltpu.VMEM((TN, H), p_start.dtype)] * 4),
        compiler_params=pltpu.CompilerParams(
            dimension_semantics=dims,
            vmem_limit_bytes=vmem_limit),
    )(start_p, end_p, p_start, p_end, p_mul)


def sic_model_forward(params, hidden_states, start_indexs, end_indexs,
                      *, out_dtype=None, max_tile=256):
    """JAX/Pallas equivalent of SICModel.forward.

    Weights are stored (in_features, out_features), i.e. params["w1"] is the
    transpose of torch's W_1.weight, so y = x @ W + b.
    """
    # Repacked projections (3*S*H^2 FLOPs total) — cheap, done as plain XLA
    # matmuls per the performance review; everything downstream is one fused
    # Pallas pass that only writes the (B, N, H) output to HBM.
    p_start = hidden_states @ (params["w1"] + params["w3"]) + (params["b1"] + params["b3"])
    p_end = hidden_states @ (params["w2"] - params["w3"]) + (params["b2"] - params["b3"])
    p_mul = hidden_states @ params["w4"] + params["b4"]
    return sic_span_pallas(p_start, p_end, p_mul, start_indexs, end_indexs,
                           out_dtype=out_dtype, max_tile=max_tile)


# -----------------------------------------------------------------------------
# Pure-JAX reference mirroring the PyTorch op order (project, then gather).
# -----------------------------------------------------------------------------
def reference_forward(params, hidden_states, start_indexs, end_indexs):
    W1_h = hidden_states @ params["w1"] + params["b1"]
    W2_h = hidden_states @ params["w2"] + params["b2"]
    W3_h = hidden_states @ params["w3"] + params["b3"]
    W4_h = hidden_states @ params["w4"] + params["b4"]
    W1_hi = jnp.take(W1_h, start_indexs, axis=1)
    W2_hj = jnp.take(W2_h, end_indexs, axis=1)
    W3_hs = jnp.take(W3_h, start_indexs, axis=1)
    W3_he = jnp.take(W3_h, end_indexs, axis=1)
    W4_hs = jnp.take(W4_h, start_indexs, axis=1)
    W4_he = jnp.take(W4_h, end_indexs, axis=1)
    span = W1_hi + W2_hj + (W3_hs - W3_he) + W4_hs * W4_he
    return jnp.tanh(span)


if __name__ == "__main__":
    B, S, H = 2, 8, 32

    key = jax.random.PRNGKey(0)
    keys = jax.random.split(key, 9)

    params = {
        "w1": jax.random.normal(keys[0], (H, H), jnp.float32) * 0.1,
        "w2": jax.random.normal(keys[1], (H, H), jnp.float32) * 0.1,
        "w3": jax.random.normal(keys[2], (H, H), jnp.float32) * 0.1,
        "w4": jax.random.normal(keys[3], (H, H), jnp.float32) * 0.1,
        "b1": jax.random.normal(keys[4], (H,), jnp.float32) * 0.1,
        "b2": jax.random.normal(keys[5], (H,), jnp.float32) * 0.1,
        "b3": jax.random.normal(keys[6], (H,), jnp.float32) * 0.1,
        "b4": jax.random.normal(keys[7], (H,), jnp.float32) * 0.1,
    }

    hidden_states = jax.random.normal(keys[8], (B, S, H), jnp.float32)

    # Span (start, end) index pairs, as produced by the enclosing model.
    pairs = [(i, j) for i in range(S) for j in range(i, S)][:16]   # N = 16
    start_indexs = jnp.array([p[0] for p in pairs], jnp.int32)
    end_indexs = jnp.array([p[1] for p in pairs], jnp.int32)
    N = int(start_indexs.shape[0])

    ref = reference_forward(params, hidden_states, start_indexs, end_indexs)

    # 1) Standard path (B > 1 grid).
    h_ij = jax.block_until_ready(
        sic_model_forward(params, hidden_states, start_indexs, end_indexs))
    assert h_ij.shape == (B, N, H)
    assert jnp.allclose(h_ij, ref, rtol=1e-4, atol=1e-4)

    # 2) B == 1 path (span axis is the only / megacore-sharded grid axis).
    h_b1 = jax.block_until_ready(
        sic_model_forward(params, hidden_states[:1], start_indexs, end_indexs))
    assert jnp.allclose(h_b1, ref[:1], rtol=1e-4, atol=1e-4)

    # 3) Ragged span tiling: N not a multiple of the span tile (cdiv grid +
    #    padded index vectors + masked boundary output block).
    h_rag = jax.block_until_ready(
        sic_model_forward(params, hidden_states, start_indexs[:14],
                          end_indexs[:14], max_tile=8))
    assert h_rag.shape == (B, 14, H)
    assert jnp.allclose(h_rag, ref[:, :14, :], rtol=1e-4, atol=1e-4)

    print("KERNEL_OK")
</pallas_src>

<mosaic_0001>
module attributes {stable_mosaic.version = 11 : i64} {
  func.func @_gather_combine_kernel(%arg0: i32, %arg1: i32, %arg2: memref<16xi32, #tpu.memory_space<smem>>, %arg3: memref<16xi32, #tpu.memory_space<smem>>, %arg4: memref<1x8x32xf32, #tpu.memory_space<vmem>>, %arg5: memref<1x8x32xf32, #tpu.memory_space<vmem>>, %arg6: memref<1x8x32xf32, #tpu.memory_space<vmem>>, %arg7: memref<1x16x32xf32, #tpu.memory_space<vmem>>, %arg8: memref<16x32xf32, #tpu.memory_space<vmem>>, %arg9: memref<16x32xf32, #tpu.memory_space<vmem>>, %arg10: memref<16x32xf32, #tpu.memory_space<vmem>>, %arg11: memref<16x32xf32, #tpu.memory_space<vmem>>) attributes {dimension_semantics = [#tpu.dimension_semantics<parallel>, #tpu.dimension_semantics<parallel>], iteration_bounds = array<i64: 2, 1>, scalar_prefetch = 2 : i64, scratch_operands = 4 : i64, tpu.core_type = #tpu.core_type<tc>, window_params = [{transform_indices = @transform_0, window_bounds = array<i64: 1, 8, 32>}, {transform_indices = @transform_1, window_bounds = array<i64: 1, 8, 32>}, {transform_indices = @transform_2, window_bounds = array<i64: 1, 8, 32>}, {transform_indices = @transform_3, window_bounds = array<i64: 1, 16, 32>}]} {
    %c16_i32 = arith.constant 16 : i32
    %0 = arith.muli %arg1, %c16_i32 : i32
    %c0_i32 = arith.constant 0 : i32
    %c16_i32_0 = arith.constant 16 : i32
    %1 = arith.addi %c0_i32, %c16_i32_0 : i32
    %c1_i32 = arith.constant 1 : i32
    scf.for %arg12 = %c0_i32 to %1 step %c1_i32  : i32 {
      %13 = arith.addi %0, %arg12 : i32
      %14 = arith.index_cast %13 : i32 to index
      %15 = memref.load %arg2[%14] : memref<16xi32, #tpu.memory_space<smem>>
      %16 = arith.addi %0, %arg12 : i32
      %17 = arith.index_cast %16 : i32 to index
      %18 = memref.load %arg3[%17] : memref<16xi32, #tpu.memory_space<smem>>
      %c0_12 = arith.constant 0 : index
      %19 = arith.index_cast %15 : i32 to index
      %c0_13 = arith.constant 0 : index
      %20 = vector.load %arg4[%c0_12, %19, %c0_13] : memref<1x8x32xf32, #tpu.memory_space<vmem>>, vector<1x1x32xf32>
      %21 = vector.shape_cast %20 : vector<1x1x32xf32> to vector<1x32xf32>
      %22 = arith.index_cast %arg12 : i32 to index
      %c0_14 = arith.constant 0 : index
      %23 = vector.load %arg8[%22, %c0_14] : memref<16x32xf32, #tpu.memory_space<vmem>>, vector<1x32xf32>
      tpu.vector_store %arg8[%22, %c0_14], %21 {strides = array<i32>} : memref<16x32xf32, #tpu.memory_space<vmem>>, vector<1x32xf32>,
      %c0_15 = arith.constant 0 : index
      %24 = arith.index_cast %18 : i32 to index
      %c0_16 = arith.constant 0 : index
      %25 = vector.load %arg5[%c0_15, %24, %c0_16] : memref<1x8x32xf32, #tpu.memory_space<vmem>>, vector<1x1x32xf32>
      %26 = vector.shape_cast %25 : vector<1x1x32xf32> to vector<1x32xf32>
      %27 = arith.index_cast %arg12 : i32 to index
      %c0_17 = arith.constant 0 : index
      %28 = vector.load %arg9[%27, %c0_17] : memref<16x32xf32, #tpu.memory_space<vmem>>, vector<1x32xf32>
      tpu.vector_store %arg9[%27, %c0_17], %26 {strides = array<i32>} : memref<16x32xf32, #tpu.memory_space<vmem>>, vector<1x32xf32>,
      %c0_18 = arith.constant 0 : index
      %29 = arith.index_cast %15 : i32 to index
      %c0_19 = arith.constant 0 : index
      %30 = vector.load %arg6[%c0_18, %29, %c0_19] : memref<1x8x32xf32, #tpu.memory_space<vmem>>, vector<1x1x32xf32>
      %31 = vector.shape_cast %30 : vector<1x1x32xf32> to vector<1x32xf32>
      %32 = arith.index_cast %arg12 : i32 to index
      %c0_20 = arith.constant 0 : index
      %33 = vector.load %arg10[%32, %c0_20] : memref<16x32xf32, #tpu.memory_space<vmem>>, vector<1x32xf32>
      tpu.vector_store %arg10[%32, %c0_20], %31 {strides = array<i32>} : memref<16x32xf32, #tpu.memory_space<vmem>>, vector<1x32xf32>,
      %c0_21 = arith.constant 0 : index
      %34 = arith.index_cast %18 : i32 to index
      %c0_22 = arith.constant 0 : index
      %35 = vector.load %arg6[%c0_21, %34, %c0_22] : memref<1x8x32xf32, #tpu.memory_space<vmem>>, vector<1x1x32xf32>
      %36 = vector.shape_cast %35 : vector<1x1x32xf32> to vector<1x32xf32>
      %37 = arith.index_cast %arg12 : i32 to index
      %c0_23 = arith.constant 0 : index
      %38 = vector.load %arg11[%37, %c0_23] : memref<16x32xf32, #tpu.memory_space<vmem>>, vector<1x32xf32>
      tpu.vector_store %arg11[%37, %c0_23], %36 {strides = array<i32>} : memref<16x32xf32, #tpu.memory_space<vmem>>, vector<1x32xf32>,
    }
    %c16_i32_1 = arith.constant 16 : i32
    %c0 = arith.constant 0 : index
    %c0_2 = arith.constant 0 : index
    %2 = vector.load %arg8[%c0, %c0_2] : memref<16x32xf32, #tpu.memory_space<vmem>>, vector<16x32xf32>
    %c0_3 = arith.constant 0 : index
    %c0_4 = arith.constant 0 : index
    %3 = vector.load %arg9[%c0_3, %c0_4] : memref<16x32xf32, #tpu.memory_space<vmem>>, vector<16x32xf32>
    %4 = arith.addf %2, %3 : vector<16x32xf32>
    %c0_5 = arith.constant 0 : index
    %c0_6 = arith.constant 0 : index
    %5 = vector.load %arg10[%c0_5, %c0_6] : memref<16x32xf32, #tpu.memory_space<vmem>>, vector<16x32xf32>
    %c0_7 = arith.constant 0 : index
    %c0_8 = arith.constant 0 : index
    %6 = vector.load %arg11[%c0_7, %c0_8] : memref<16x32xf32, #tpu.memory_space<vmem>>, vector<16x32xf32>
    %7 = arith.mulf %5, %6 : vector<16x32xf32>
    %8 = arith.addf %4, %7 : vector<16x32xf32>
    %9 = math.tanh %8 : vector<16x32xf32>
    %c0_9 = arith.constant 0 : index
    %c0_10 = arith.constant 0 : index
    %c0_11 = arith.constant 0 : index
    %10 = vector.load %arg7[%c0_9, %c0_10, %c0_11] : memref<1x16x32xf32, #tpu.memory_space<vmem>>, vector<1x16x32xf32>
    %11 = vector.shape_cast %10 : vector<1x16x32xf32> to vector<16x32xf32>
    %12 = vector.shape_cast %9 : vector<16x32xf32> to vector<1x16x32xf32>
    tpu.vector_store %arg7[%c0_9, %c0_10, %c0_11], %12 {strides = array<i32>} : memref<1x16x32xf32, #tpu.memory_space<vmem>>, vector<1x16x32xf32>,
    return
  }
  func.func @transform_0(%arg0: i32, %arg1: i32, %arg2: memref<16xi32, #tpu.memory_space<smem>>, %arg3: memref<16xi32, #tpu.memory_space<smem>>) -> (i32, i32, i32) {
    %c0_i32 = arith.constant 0 : i32
    %c0_i32_0 = arith.constant 0 : i32
    %c0_i32_1 = arith.constant 0 : i32
    return %arg0, %c0_i32, %c0_i32_0 : i32, i32, i32
  }
  func.func @transform_1(%arg0: i32, %arg1: i32, %arg2: memref<16xi32, #tpu.memory_space<smem>>, %arg3: memref<16xi32, #tpu.memory_space<smem>>) -> (i32, i32, i32) {
    %c0_i32 = arith.constant 0 : i32
    %c0_i32_0 = arith.constant 0 : i32
    %c0_i32_1 = arith.constant 0 : i32
    return %arg0, %c0_i32, %c0_i32_0 : i32, i32, i32
  }
  func.func @transform_2(%arg0: i32, %arg1: i32, %arg2: memref<16xi32, #tpu.memory_space<smem>>, %arg3: memref<16xi32, #tpu.memory_space<smem>>) -> (i32, i32, i32) {
    %c0_i32 = arith.constant 0 : i32
    %c0_i32_0 = arith.constant 0 : i32
    %c0_i32_1 = arith.constant 0 : i32
    return %arg0, %c0_i32, %c0_i32_0 : i32, i32, i32
  }
  func.func @transform_3(%arg0: i32, %arg1: i32, %arg2: memref<16xi32, #tpu.memory_space<smem>>, %arg3: memref<16xi32, #tpu.memory_space<smem>>) -> (i32, i32, i32) {
    %c0_i32 = arith.constant 0 : i32
    %c0_i32_0 = arith.constant 0 : i32
    return %arg0, %arg1, %c0_i32 : i32, i32, i32
  }
}

</mosaic_0001>

<llo_original>
// kernel: tpu_custom_call.1
$region0: #{tpu_custom_call.1}
  #allocation0 [shape = 'u32[]', space=smem, size = 0x4, offset = 0x4, fixed_abs, tag = 'smem constant byte address 0x4 - core index']
  #allocation1 [shape = 'u32[144,128]{1,0:T(1,128)}', space=vmem, size = 0x12000, scoped, tag = 'internal scratch']
  #allocation2 [shape = 'f32[16,32]{1,0:T(8,128)}', space=vmem, size = 0x2000, scoped, tag = 'scratch operand']
  #allocation3 [shape = 'f32[16,32]{1,0:T(8,128)}', space=vmem, size = 0x2000, scoped, tag = 'scratch operand']
  #allocation4 [shape = 'f32[16,32]{1,0:T(8,128)}', space=vmem, size = 0x2000, scoped, tag = 'scratch operand']
  #allocation5 [shape = 'f32[16,32]{1,0:T(8,128)}', space=vmem, size = 0x2000, scoped, tag = 'scratch operand']
  #allocation6 [shape = 's32[1]{0}', space=sflag, size = 0x4, scoped, tag = 'scoped memory for tpu_custom_call.1']
  #allocation7 [shape = 'u8[512]{0}', space=smem, size = 0x200, scoped, tag = 'prefetched SMEM operand 0']
  #allocation8 [shape = 'u8[512]{0}', space=smem, size = 0x200, scoped, tag = 'prefetched SMEM operand 1']
  %s0 = inlined_call_operand.hbm [shape: s32[16], index: 0, kind: input, shape index: {}]
  %s1 = inlined_call_operand.vmem [shape: s32[16], index: 1, kind: input, shape index: {}]
  %s2 = inlined_call_operand.hbm [shape: f32[2,8,32], index: 2, kind: input, shape index: {}]
  %s3 = inlined_call_operand.hbm [shape: f32[2,8,32], index: 3, kind: input, shape index: {}]
  %s4 = inlined_call_operand.hbm [shape: f32[2,8,32], index: 4, kind: input, shape index: {}]
  %s5 = inlined_call_operand.hbm [shape: f32[2,16,32], index: 5, kind: output, shape index: {}]
  %s6 = sld [smem:[#allocation0]]
  $region64: #{tpu_custom_call.1} parent=0
    _
  %s8 = ssub.s32 1, %s6
  %s9 = scalar_select 0, %s8, %s6
  %11 = dma.hbm_to_smem %s0, 16, [#allocation7], [#allocation6]
  %s12 = sshll.u32 %s1, 4
  %s13 = int_to_ptr.vmem [resolvable:$true] %s12
  %15 = dma.vmem_to_smem %s13, 16, [#allocation8], [#allocation6]
  %16 = dma.done [#allocation6], 32
  %17 = sfence
  $region1: #{tpu_custom_call.1} parent=0
    #allocation9 [shape = 'u8[8192]{0}', space=vmem, size = 0x2000, scoped, tag = 'input window, operand 2']
    #allocation10 [shape = 's32[2]{0}', space=sflag, size = 0x8, scoped, tag = 'scoped memory for tpu_custom_call.1']
    #allocation11 [shape = 's32[2]{0}', space=sflag, size = 0x8, scoped, tag = 'scoped memory for tpu_custom_call.1']
    #allocation12 [shape = 'u8[8192]{0}', space=vmem, size = 0x2000, scoped, tag = 'input window, operand 3']
    #allocation13 [shape = 's32[2]{0}', space=sflag, size = 0x8, scoped, tag = 'scoped memory for tpu_custom_call.1']
    #allocation14 [shape = 'u8[8192]{0}', space=vmem, size = 0x2000, scoped, tag = 'input window, operand 4']
    #allocation15 [shape = 'u8[16384]{0}', space=vmem, size = 0x4000, scoped, tag = 'output window, operand 0']
    %18 = vsyncpa [#allocation10], 0
    %s19 = scalar_lea.sflag [#allocation10], 1
    %20 = vsyncpa %s19, 0
    %21 = vsyncpa [#allocation13], 0
    %s22 = scalar_lea.sflag [#allocation13], 1
    %23 = vsyncpa %s22, 0
    %24 = vsyncpa [#allocation11], 0
    %s25 = scalar_lea.sflag [#allocation11], 1
    %26 = vsyncpa %s25, 0
    loop: start=0, step=1, limit=4
    $region2: #{tpu_custom_call.1} parent=1 // loop_pre_header
      _
    $region3: #{tpu_custom_call.1} parent=1 // loop_header
      %s28 = sphi 0, %s32
      %p29 = scmp.ge.s32.totalorder %s28, 4
      %s35 = sphi 0, %s47
      %s36 = sphi 0, %s43
      %s37 = sphi 0, %s35
      %s38 = sphi 0, %s36
      %s39 = sphi 0, %s37
      %s40 = sphi 0, %s38
      %s50 = sphi 0, %s52
      %s53 = sphi 0, %s50
      %s54 = sphi 0, %s53
      %s70 = sphi 0, %s54
      %s76 = sphi 0, %s78
      %s79 = sphi 0, %s76
      %s80 = sphi 0, %s79
      %s96 = sphi 0, %s80
      %s102 = sphi 0, %s104
      %s105 = sphi 0, %s102
      %s106 = sphi 0, %s105
      %s122 = sphi 0, %s106
      %s130 = sphi 0, %s132
      %s133 = sphi 0, %s130
      %s134 = sphi 0, %s133
      %s150 = sphi 0, %s134
    $region4: #{tpu_custom_call.1} parent=1 // loop_header_branch
      %31 = sbr.rel (%p29) target = $region8
    $region5: #{tpu_custom_call.1} parent=1 // loop_body
      %s33 = ssub.s32 %s28, 1
      %s34 = ssub.s32 %s28, 2
      %s41 = sadd.s32 1, %s36
      %p42 = scmp.ge.s32.totalorder %s41, 1
      %s43 = scalar_select %p42, 0, %s41
      %s44 = sadd.s32 1, %s35
      %s45 = scalar_select %p42, %s44, %s35
      %p46 = scmp.ge.s32.totalorder %s45, 2
      %s47 = scalar_select %p46, 0, %s45
      %s48 = ssub.s32 %s35, %s47
      %p49 = scmp.eq.s32.totalorder %s48, 0
      %s51 = sadd.s32 %s50, 1
      %s52 = scalar_select %p49, %s50, %s51
      %p55 = pneg %p49
      %p56 = scmp.eq.s32.totalorder %s28, 1
      %p57 = por %p55, %p56
      %p58 = scmp.ne.s32.totalorder %s50, %s53
      %p59 = scmp.eq.s32.totalorder %s28, 0
      %p60 = por %p58, %p59
      %p61 = scmp.ne.s32.totalorder %s50, %s53
      %p62 = scmp.eq.s32.totalorder %s33, 1
      %p63 = por %p61, %p62
      %p64 = scmp.ne.s32.totalorder %s53, %s54
      %p65 = scmp.eq.s32.totalorder %s33, 0
      %p66 = por %p64, %p65
      %p67 = scmp.ne.s32.totalorder %s53, %s54
      %p68 = scmp.eq.s32.totalorder %s34, 1
      %p69 = por %p67, %p68
      %p71 = scmp.ne.s32.totalorder %s54, %s70
      %p72 = scmp.eq.s32.totalorder %s34, 0
      %p73 = por %p71, %p72
      %s74 = ssub.s32 %s35, %s47
      %p75 = scmp.eq.s32.totalorder %s74, 0
      %s77 = sadd.s32 %s76, 1
      %s78 = scalar_select %p75, %s76, %s77
      %p81 = pneg %p75
      %p82 = scmp.eq.s32.totalorder %s28, 1
      %p83 = por %p81, %p82
      %p84 = scmp.ne.s32.totalorder %s76, %s79
      %p85 = scmp.eq.s32.totalorder %s28, 0
      %p86 = por %p84, %p85
      %p87 = scmp.ne.s32.totalorder %s76, %s79
      %p88 = scmp.eq.s32.totalorder %s33, 1
      %p89 = por %p87, %p88
      %p90 = scmp.ne.s32.totalorder %s79, %s80
      %p91 = scmp.eq.s32.totalorder %s33, 0
      %p92 = por %p90, %p91
      %p93 = scmp.ne.s32.totalorder %s79, %s80
      %p94 = scmp.eq.s32.totalorder %s34, 1
      %p95 = por %p93, %p94
      %p97 = scmp.ne.s32.totalorder %s80, %s96
      %p98 = scmp.eq.s32.totalorder %s34, 0
      %p99 = por %p97, %p98
      %s100 = ssub.s32 %s35, %s47
      %p101 = scmp.eq.s32.totalorder %s100, 0
      %s103 = sadd.s32 %s102, 1
      %s104 = scalar_select %p101, %s102, %s103
      %p107 = pneg %p101
      %p108 = scmp.eq.s32.totalorder %s28, 1
      %p109 = por %p107, %p108
      %p110 = scmp.ne.s32.totalorder %s102, %s105
      %p111 = scmp.eq.s32.totalorder %s28, 0
      %p112 = por %p110, %p111
      %p113 = scmp.ne.s32.totalorder %s102, %s105
      %p114 = scmp.eq.s32.totalorder %s33, 1
      %p115 = por %p113, %p114
      %p116 = scmp.ne.s32.totalorder %s105, %s106
      %p117 = scmp.eq.s32.totalorder %s33, 0
      %p118 = por %p116, %p117
      %p119 = scmp.ne.s32.totalorder %s105, %s106
      %p120 = scmp.eq.s32.totalorder %s34, 1
      %p121 = por %p119, %p120
      %p123 = scmp.ne.s32.totalorder %s106, %s122
      %p124 = scmp.eq.s32.totalorder %s34, 0
      %p125 = por %p123, %p124
      %s126 = ssub.s32 %s35, %s47
      %s127 = ssub.s32 %s36, %s43
      %s128 = sor.u32 %s126, %s127
      %p129 = scmp.eq.s32.totalorder %s128, 0
      %s131 = sadd.s32 %s130, 1
      %s132 = scalar_select %p129, %s130, %s131
      %p135 = pneg %p129
      %p136 = scmp.eq.s32.totalorder %s28, 1
      %p137 = por %p135, %p136
      %p138 = scmp.ne.s32.totalorder %s130, %s133
      %p139 = scmp.eq.s32.totalorder %s28, 0
      %p140 = por %p138, %p139
      %p141 = scmp.ne.s32.totalorder %s130, %s133
      %p142 = scmp.eq.s32.totalorder %s33, 1
      %p143 = por %p141, %p142
      %p144 = scmp.ne.s32.totalorder %s133, %s134
      %p145 = scmp.eq.s32.totalorder %s33, 0
      %p146 = por %p144, %p145
      %p147 = scmp.ne.s32.totalorder %s133, %s134
      %p148 = scmp.eq.s32.totalorder %s34, 1
      %p149 = por %p147, %p148
      %p151 = scmp.ne.s32.totalorder %s134, %s150
      %p152 = scmp.eq.s32.totalorder %s34, 0
      %p153 = por %p151, %p152
      %p154 = scmp.le.s32.totalorder 1, %s28
      %p155 = scmp.lt.s32.totalorder %s28, 3
      %p156 = pnand %p154, %p155
      %p157 = pneg %p156
      // Predicated region
      $region9: #{tpu_custom_call.1} parent=5 // pred_check
        _
      $region10: #{tpu_custom_call.1} parent=5 // pred_check_branch
        %159 = sbr.rel (%p156) target = $region12
      $region11: #{tpu_custom_call.1} parent=5 // pred_region
        %s160 = ssub.s32 %s28, 1
      $region12: #{tpu_custom_call.1} parent=5 // pred_fallthru
        _
      %p161 = scmp.lt.s32.totalorder %s28, 2
      // Predicated region
      $region13: #{tpu_custom_call.1} parent=5 // pred_check
        %p162 = pneg %p161
      $region14: #{tpu_custom_call.1} parent=5 // pred_check_branch
        %164 = sbr.rel (%p162) target = $region16
      $region15: #{tpu_custom_call.1} parent=5 // pred_region
        // Predicated region
        $region17: #{tpu_custom_call.1} parent=15 // pred_check
          %p165 = pneg %p60
        $region18: #{tpu_custom_call.1} parent=15 // pred_check_branch
          %167 = sbr.rel (%p165) target = $region20
        $region19: #{tpu_custom_call.1} parent=15 // pred_region
          %s168 = sand.u32 %s50, 1
          %s169 = scalar_lea.sflag [#allocation10], %s168
          %s170 = sand.u32 %s50, 1
          %s171 = smul.addr %s170, 8
          %s172 = scalar_lea.vmem [#allocation9], %s171
          %s174 = ssub.s32 128, 128
          %175 = vsyncadd %s169, %s174
          %s176 = smul.addr %s35, 128
          %s177 = scalar_lea.hbm %s2, %s176
          %s179 = sshll.u32 %s172, 4
          %s180 = int_to_ptr.vmem [resolvable:$true] %s179
          %182 = dma.hbm_to_vmem [thread:$0]  %s177, 128, %s180, %s169
        $region20: #{tpu_custom_call.1} parent=15 // pred_fallthru
          _
        // Predicated region
        $region21: #{tpu_custom_call.1} parent=15 // pred_check
          %p183 = pneg %p86
        $region22: #{tpu_custom_call.1} parent=15 // pred_check_branch
          %185 = sbr.rel (%p183) target = $region24
        $region23: #{tpu_custom_call.1} parent=15 // pred_region
          %s186 = sand.u32 %s28, 1
          %s187 = scalar_lea.sflag [#allocation13], %s186
          %s188 = sand.u32 %s76, 1
          %s189 = smul.addr %s188, 8
          %s190 = scalar_lea.vmem [#allocation12], %s189
          %s192 = ssub.s32 128, 128
          %193 = vsyncadd %s187, %s192
          %s194 = smul.addr %s35, 128
          %s195 = scalar_lea.hbm %s3, %s194
          %s197 = sshll.u32 %s190, 4
          %s198 = int_to_ptr.vmem [resolvable:$true] %s197
          %200 = dma.hbm_to_vmem [thread:$0]  %s195, 128, %s198, %s187
        $region24: #{tpu_custom_call.1} parent=15 // pred_fallthru
          _
        // Predicated region
        $region25: #{tpu_custom_call.1} parent=15 // pred_check
          %p201 = pneg %p112
        $region26: #{tpu_custom_call.1} parent=15 // pred_check_branch
          %203 = sbr.rel (%p201) target = $region28
        $region27: #{tpu_custom_call.1} parent=15 // pred_region
          %s204 = sand.u32 %s28, 1
          %s205 = scalar_lea.sflag [#allocation13], %s204
          %s206 = sand.u32 %s102, 1
          %s207 = smul.addr %s206, 8
          %s208 = scalar_lea.vmem [#allocation14], %s207
          %s210 = ssub.s32 128, 128
          %211 = vsyncadd %s205, %s210
          %s212 = smul.addr %s35, 128
          %s213 = scalar_lea.hbm %s4, %s212
          %s215 = sshll.u32 %s208, 4
          %s216 = int_to_ptr.vmem [resolvable:$true] %s215
          %218 = dma.hbm_to_vmem [thread:$0]  %s213, 128, %s216, %s205
        $region28: #{tpu_custom_call.1} parent=15 // pred_fallthru
          _
      $region16: #{tpu_custom_call.1} parent=5 // pred_fallthru
        _
      %p219 = scmp.le.s32.totalorder 1, %s28
      %p220 = scmp.lt.s32.totalorder %s28, 3
      %p221 = pnand %p219, %p220
      %p222 = pneg %p221
      // Predicated region
      $region29: #{tpu_custom_call.1} parent=5 // pred_check
        _
      $region30: #{tpu_custom_call.1} parent=5 // pred_check_branch
        %224 = sbr.rel (%p221) target = $region32
      $region31: #{tpu_custom_call.1} parent=5 // pred_region
        %s225 = ssub.s32 %s28, 1
        %s226 = sand.u32 %s53, 1
        %s227 = scalar_lea.sflag [#allocation10], %s226
        %s228 = sand.u32 %s53, 1
        %s229 = smul.addr %s228, 8
        %s230 = scalar_lea.vmem [#allocation9], %s229
        // Predicated region
        $region33: #{tpu_custom_call.1} parent=31 // pred_check
          %p231 = pneg %p66
        $region34: #{tpu_custom_call.1} parent=31 // pred_check_branch
          %233 = sbr.rel (%p231) target = $region36
        $region35: #{tpu_custom_call.1} parent=31 // pred_region
          %234 = dma.done %s227, 128
        $region36: #{tpu_custom_call.1} parent=31 // pred_fallthru
          _
        %s235 = sand.u32 %s33, 1
        %s236 = scalar_lea.sflag [#allocation13], %s235
        %s237 = sand.u32 %s79, 1
        %s238 = smul.addr %s237, 8
        %s239 = scalar_lea.vmem [#allocation12], %s238
        // Predicated region
        $region37: #{tpu_custom_call.1} parent=31 // pred_check
          %p240 = pneg %p92
        $region38: #{tpu_custom_call.1} parent=31 // pred_check_branch
          %242 = sbr.rel (%p240) target = $region40
        $region39: #{tpu_custom_call.1} parent=31 // pred_region
          %243 = dma.done %s236, 128
        $region40: #{tpu_custom_call.1} parent=31 // pred_fallthru
          _
        %s244 = sand.u32 %s33, 1
        %s245 = scalar_lea.sflag [#allocation13], %s244
        %s246 = sand.u32 %s105, 1
        %s247 = smul.addr %s246, 8
        %s248 = scalar_lea.vmem [#allocation14], %s247
        // Predicated region
        $region41: #{tpu_custom_call.1} parent=31 // pred_check
          %p249 = pneg %p118
        $region42: #{tpu_custom_call.1} parent=31 // pred_check_branch
          %251 = sbr.rel (%p249) target = $region44
        $region43: #{tpu_custom_call.1} parent=31 // pred_region
          %252 = dma.done %s245, 128
        $region44: #{tpu_custom_call.1} parent=31 // pred_fallthru
          _
        %s253 = sand.u32 %s53, 1
        %s254 = scalar_lea.sflag [#allocation10], %s253
        %s255 = sand.u32 %s53, 1
        %s256 = smul.addr %s255, 8
        %s257 = scalar_lea.vmem [#allocation9], %s256
        %p258 = pneg %p66
        %p259 = pneg %p63
        %s260 = sand.u32 %s33, 1
        %s261 = scalar_lea.sflag [#allocation13], %s260
        %s262 = sand.u32 %s79, 1
        %s263 = smul.addr %s262, 8
        %s264 = scalar_lea.vmem [#allocation12], %s263
        %p265 = pneg %p92
        %p266 = pneg %p89
        %s267 = sand.u32 %s33, 1
        %s268 = scalar_lea.sflag [#allocation13], %s267
        %s269 = sand.u32 %s105, 1
        %s270 = smul.addr %s269, 8
        %s271 = scalar_lea.vmem [#allocation14], %s270
        %p272 = pneg %p118
        %p273 = pneg %p115
        %p274 = pneg %p146
        %p275 = pneg %p143
        %s276 = sand.u32 %s133, 1
        %s277 = scalar_lea.sflag [#allocation11], %s276
        %s278 = sand.u32 %s133, 1
        %s279 = smul.addr %s278, 16
        %s280 = scalar_lea.vmem [#allocation15], %s279
        %s281 = smul.u32 2, %s38
        %s282 = smul.u32 %s38, 16
        loop: start=0, step=1, limit=16
        $region45: #{tpu_custom_call.1} parent=31 // loop_pre_header
          _
        $region46: #{tpu_custom_call.1} parent=31 // loop_header
          %s284 = sphi 0, %s288
          %p285 = scmp.ge.s32.totalorder %s284, 16
        $region47: #{tpu_custom_call.1} parent=31 // loop_header_branch
          %287 = sbr.rel (%p285) target = $region51
        $region48: #{tpu_custom_call.1} parent=31 // loop_body
          %s289 = sadd.s32 %s282, %s284
          %s290 = sld [smem:[#allocation7 + %s289]]
          %s291 = sld [smem:[#allocation8 + %s289]]
          %s292 = scalar_lea.vmem %s230, %s290 [#allocation9]
          %v293 = vld [vmem:[%s292] sm:$0x1]
          %s294 = scalar_lea.vmem [#allocation2], %s284
          %vm295 = vcmask 253952
          %296 = vst.msk [vmem:[%s294] sm:$0x1] %vm295, %v293
          %s297 = scalar_lea.vmem %s239, %s291 [#allocation12]
          %v298 = vld [vmem:[%s297] sm:$0x1]
          %s299 = scalar_lea.vmem [#allocation3], %s284
          %300 = vst.msk [vmem:[%s299] sm:$0x1] %vm295, %v298
          %s301 = scalar_lea.vmem %s248, %s290 [#allocation14]
          %v302 = vld [vmem:[%s301] sm:$0x1]
          %s303 = scalar_lea.vmem [#allocation4], %s284
          %304 = vst.msk [vmem:[%s303] sm:$0x1] %vm295, %v302
          %s305 = scalar_lea.vmem %s248, %s291 [#allocation14]
          %v306 = vld [vmem:[%s305] sm:$0x1]
          %s307 = scalar_lea.vmem [#allocation5], %s284
          %308 = vst.msk [vmem:[%s307] sm:$0x1] %vm295, %v306
        $region49: #{tpu_custom_call.1} parent=31 // loop_footer
          %s288 = sadd.s32 1, %s284
        $region50: #{tpu_custom_call.1} parent=31 // loop_footer_branch
          %283 = sbr.rel target = $region46
        $region51: #{tpu_custom_call.1} parent=31 // loop_exit
          _
        %v309 = vld [vmem:[#allocation2] sm:$0xff]
        %v310 = vld [vmem:[#allocation2 + $0x8] sm:$0xff]
        %v311 = vld [vmem:[#allocation3] sm:$0xff]
        %v312 = vld [vmem:[#allocation3 + $0x8] sm:$0xff]
        %v313 = vadd.f32 %v309, %v311
        %v314 = vadd.f32 %v310, %v312
        %v315 = vld [vmem:[#allocation4] sm:$0xff]
        %v316 = vld [vmem:[#allocation4 + $0x8] sm:$0xff]
        %v317 = vld [vmem:[#allocation5] sm:$0xff]
        %v318 = vld [vmem:[#allocation5 + $0x8] sm:$0xff]
        %v319 = vmul.f32 %v315, %v317
        %v320 = vmul.f32 %v316, %v318
        %v321 = vadd.f32 %v313, %v319
        %v322 = vadd.f32 %v314, %v320
        %v323 = vtanh.pop %v321
        %v324 = vtanh.pop %v322
        %vm325 = vcmask 261120
        %326 = vst.msk [vmem:[%s280] sm:$0xff] %vm325, %v323
        %327 = vst.msk [vmem:[%s280 + $0x8] sm:$0xff] %vm325, %v324
        %s328 = sand.u32 %s133, 1
        %s329 = scalar_lea.sflag [#allocation11], %s328
        %s330 = sand.u32 %s133, 1
        %s331 = smul.addr %s330, 16
        %s332 = scalar_lea.vmem [#allocation15], %s331
        // Predicated region
        $region52: #{tpu_custom_call.1} parent=31 // pred_check
          %p333 = pneg %p143
        $region53: #{tpu_custom_call.1} parent=31 // pred_check_branch
          %335 = sbr.rel (%p333) target = $region55
        $region54: #{tpu_custom_call.1} parent=31 // pred_region
          %s336 = smul.u32 2, %s38
          %s338 = ssub.s32 256, 256
          %339 = vsyncadd %s329, %s338
          %s340 = smul.addr %s37, 2
          %s341 = sadd.s32 %s336, %s340
          %s342 = smul.addr %s341, 128
          %s343 = scalar_lea.hbm %s5, %s342
          %s344 = sshll.u32 %s332, 4
          %s345 = int_to_ptr.vmem [resolvable:$true] %s344
          %350 = dma.vmem_to_hbm [thread:$0]  %s345, 256, %s343, %s329, 128, 128, 8
        $region55: #{tpu_custom_call.1} parent=31 // pred_fallthru
          _
      $region32: #{tpu_custom_call.1} parent=5 // pred_fallthru
        _
      %p351 = scmp.le.s32.totalorder 2, %s28
      // Predicated region
      $region56: #{tpu_custom_call.1} parent=5 // pred_check
        %p352 = pneg %p351
      $region57: #{tpu_custom_call.1} parent=5 // pred_check_branch
        %354 = sbr.rel (%p352) target = $region59
      $region58: #{tpu_custom_call.1} parent=5 // pred_region
        %s355 = ssub.s32 %s28, 2
        // Predicated region
        $region60: #{tpu_custom_call.1} parent=58 // pred_check
          %p356 = pneg %p149
        $region61: #{tpu_custom_call.1} parent=58 // pred_check_branch
          %358 = sbr.rel (%p356) target = $region63
        $region62: #{tpu_custom_call.1} parent=58 // pred_region
          %s359 = sand.u32 %s134, 1
          %s360 = scalar_lea.sflag [#allocation11], %s359
          %s361 = sand.u32 %s134, 1
          %s362 = smul.addr %s361, 16
          %s363 = scalar_lea.vmem [#allocation15], %s362
          %364 = dma.done %s360, 256
        $region63: #{tpu_custom_call.1} parent=58 // pred_fallthru
          _
      $region59: #{tpu_custom_call.1} parent=5 // pred_fallthru
        _
    $region6: #{tpu_custom_call.1} parent=1 // loop_footer
      %s32 = sadd.s32 1, %s28
    $region7: #{tpu_custom_call.1} parent=1 // loop_footer_branch
      %27 = sbr.rel target = $region3
    $region8: #{tpu_custom_call.1} parent=1 // loop_exit
      _
    %365 = vsyncpa [#allocation10], 1
    %s366 = scalar_lea.sflag [#allocation10], 1
    %367 = vsyncpa %s366, 1
    %368 = vsyncpa [#allocation13], 1
    %s369 = scalar_lea.sflag [#allocation13], 1
    %370 = vsyncpa %s369, 1
    %371 = vsyncpa [#allocation11], 1
    %s372 = scalar_lea.sflag [#allocation11], 1
    %373 = vsyncpa %s372, 1

</llo_original>
